<compile_context>
chip_gen: v6e
topology: v6e:2x2x1
jax: 0.10.0
libtpu: 0.0.40
codegen_flags: <defaults>
</compile_context>

<pallas_src>
import jax
import jax.numpy as jnp
from jax.experimental import pallas as pl
from jax.experimental.pallas import tpu as pltpu


def _round_up(x, m):
    return (x + m - 1) // m * m


# ---------------------------------------------------------------------------
# Kernel
# ---------------------------------------------------------------------------
def decoder_mlp_kernel(x_ref, w1_ref, b1_ref, w2_ref, b2_ref, o_ref):
    # x : (TM, F)     w1: (F, H)    b1: (1, H)
    # w2: (H, L)      b2: (1, L)    o : (TM, L)
    #
    # Cast the x tile to the weight dtype so bf16 weights hit the bf16 MXU
    # (no-op when everything is f32).  MXU accumulate + epilogue stay f32.
    x = x_ref[...].astype(w1_ref.dtype)

    h = jnp.dot(x, w1_ref[...], preferred_element_type=jnp.float32)
    h = jnp.maximum(h + b1_ref[...].astype(jnp.float32), 0.0)          # ReLU

    z = jnp.dot(h.astype(w2_ref.dtype), w2_ref[...],
                preferred_element_type=jnp.float32)
    z = z + b2_ref[...].astype(jnp.float32)
    o_ref[...] = jax.nn.sigmoid(z).astype(o_ref.dtype)                 # Sigmoid


# ---------------------------------------------------------------------------
# Wrapper
# ---------------------------------------------------------------------------
_VMEM_BUDGET_BYTES = 12 * 1024 * 1024   # fits v5e 16 MiB / v7x 32 MiB scoped defaults


def _vmem_footprint_bytes(tm, F, H, L, x_bytes, w_bytes, out_bytes):
    x_tile = 2 * tm * F * x_bytes                  # double-buffered x stream
    o_tile = 2 * tm * L * out_bytes                # double-buffered output stream
    weights = (F * H + H * L) * w_bytes            # single-buffered residents
    biases = (H + L) * 4
    h_tmp = tm * H * 4                             # fused hidden activation (f32, VMEM only)
    return x_tile + o_tile + weights + biases + h_tmp


def prepare_params(w1, b1, w2, b2, *, weight_dtype=None):
    """Hoist the optional low-precision weight cast out of the per-call path.

    bf16 weights are fine on every TPU generation (v5e included): only the MXU
    ever sees them; the VPU/EUP epilogue stays f32 inside the kernel.
    """
    H = w1.shape[1]
    L = w2.shape[1]
    b1 = jnp.reshape(b1, (1, H)).astype(jnp.float32)
    b2 = jnp.reshape(b2, (1, L)).astype(jnp.float32)
    if weight_dtype is not None:
        w1 = w1.astype(weight_dtype)
        w2 = w2.astype(weight_dtype)
    return w1, b1, w2, b2


def decoder_mlp(x, w1, b1, w2, b2, *, tm=None):
    """Fused single-hidden-layer decoder MLP: sigmoid(relu(x@W1+b1)@W2+b2).

    x : (B, F) float32 (or bfloat16 to halve the dominant HBM stream)
    w1: (F, H), b1: (1, H) or (H,)     (optionally bf16 via prepare_params)
    w2: (H, L), b2: (1, L) or (L,)
    returns (B, L) in x.dtype
    """
    B, F = x.shape
    Fw, H = w1.shape
    Hw, L = w2.shape
    assert Fw == F and Hw == H
    b1 = jnp.reshape(b1, (1, H))
    b2 = jnp.reshape(b2, (1, L))

    out_dtype = x.dtype
    x_bytes = jnp.dtype(x.dtype).itemsize
    w_bytes = jnp.dtype(w1.dtype).itemsize
    out_bytes = jnp.dtype(out_dtype).itemsize

    # Batch tile: aim for >=4 grid steps (bounded boundary waste, keeps the
    # pipeline and both v7x TensorCores busy), capped at 512 rows.
    if tm is None:
        tm = min(512, _round_up(pl.cdiv(B, 4), 8))
    tm = max(8, _round_up(min(tm, _round_up(B, 8)), 8))

    # Clamp tm so the tile footprint stays under a conservative VMEM budget.
    while tm > 8 and _vmem_footprint_bytes(
            tm, F, H, L, x_bytes, w_bytes, out_bytes) > _VMEM_BUDGET_BYTES:
        tm = max(8, _round_up(tm // 2, 8))
    # TODO(synk): if the resident weights alone exceed VMEM (very large F*H /
    # H*L), add a K/H-tiling grid axis ("arbitrary") with an f32 accumulator
    # instead of keeping both weight matrices fully resident.

    grid = (pl.cdiv(B, tm),)

    cost = pl.CostEstimate(
        flops=2 * B * (F * H + H * L),
        transcendentals=B * L,                       # sigmoid
        bytes_accessed=(B * F * x_bytes
                        + (F * H + H * L) * w_bytes
                        + (H + L) * 4
                        + B * L * out_bytes),
    )

    resident = pl.Buffered(1)   # constant across the grid: no double-buffering

    return pl.pallas_call(
        decoder_mlp_kernel,
        out_shape=jax.ShapeDtypeStruct((B, L), out_dtype),
        grid_spec=pltpu.PrefetchScalarGridSpec(
            num_scalar_prefetch=0,
            grid=grid,
            in_specs=[
                pl.BlockSpec((tm, F), lambda i: (i, 0)),                         # x: batch-tiled
                pl.BlockSpec((F, H), lambda i: (0, 0), pipeline_mode=resident),  # W1 resident
                pl.BlockSpec((1, H), lambda i: (0, 0), pipeline_mode=resident),  # b1 resident
                pl.BlockSpec((H, L), lambda i: (0, 0), pipeline_mode=resident),  # W2 resident
                pl.BlockSpec((1, L), lambda i: (0, 0), pipeline_mode=resident),  # b2 resident
            ],
            out_specs=pl.BlockSpec((tm, L), lambda i: (i, 0)),
        ),
        compiler_params=pltpu.CompilerParams(
            dimension_semantics=("parallel",),
        ),
        cost_estimate=cost,
    )(x, w1, b1, w2, b2)


# ---------------------------------------------------------------------------
# Init / reference / self-test
# ---------------------------------------------------------------------------
def init_params(key, in_features, hidden_dim, latent_dim):
    """PyTorch-Linear-like uniform init, stored pre-transposed as (in, out)."""
    k1, k2, k3, k4 = jax.random.split(key, 4)
    bound1 = 1.0 / jnp.sqrt(in_features)
    bound2 = 1.0 / jnp.sqrt(hidden_dim)
    w1 = jax.random.uniform(k1, (in_features, hidden_dim), jnp.float32,
                            -bound1, bound1)
    b1 = jax.random.uniform(k2, (1, hidden_dim), jnp.float32, -bound1, bound1)
    w2 = jax.random.uniform(k3, (hidden_dim, latent_dim), jnp.float32,
                            -bound2, bound2)
    b2 = jax.random.uniform(k4, (1, latent_dim), jnp.float32, -bound2, bound2)
    return w1, b1, w2, b2


def reference(x, w1, b1, w2, b2):
    h = jnp.maximum(x @ w1 + b1, 0.0)
    return jax.nn.sigmoid(h @ w2 + b2)


if __name__ == "__main__":
    # Small shapes consistent with the module.  batch=50 -> tm=16, a 4-step
    # grid including a partial boundary block (rows 48..63 over 50 rows),
    # i.e. the un-padded-HBM path is exercised.
    batch, in_features, hidden_dim, latent_dim = 50, 16, 32, 8

    key = jax.random.PRNGKey(0)
    kx, kp = jax.random.split(key)
    x = jax.random.normal(kx, (batch, in_features), jnp.float32)
    w1, b1, w2, b2 = init_params(kp, in_features, hidden_dim, latent_dim)

    ref = reference(x, w1, b1, w2, b2)

    # f32 path (tight tolerance vs reference).
    out = jax.block_until_ready(decoder_mlp(x, w1, b1, w2, b2))
    assert out.shape == (batch, latent_dim)
    assert jnp.allclose(out, ref, atol=1e-4, rtol=1e-4), "f32 mismatch vs reference"

    # bf16-weight path (bf16 MXU, f32 epilogue) -- looser tolerance.
    w1b, b1b, w2b, b2b = prepare_params(w1, b1, w2, b2, weight_dtype=jnp.bfloat16)
    out_bf16 = jax.block_until_ready(decoder_mlp(x, w1b, b1b, w2b, b2b))
    assert out_bf16.shape == (batch, latent_dim)
    assert jnp.allclose(out_bf16, ref, atol=2e-2, rtol=2e-2), "bf16 mismatch vs reference"

    print("KERNEL_OK")
</pallas_src>

<mosaic_0001>
module attributes {stable_mosaic.version = 11 : i64} {
  func.func @decoder_mlp_kernel(%arg0: i32, %arg1: memref<16x16xf32, #tpu.memory_space<vmem>>, %arg2: memref<16x32xf32, #tpu.memory_space<vmem>>, %arg3: memref<1x32xf32, #tpu.memory_space<vmem>>, %arg4: memref<32x8xf32, #tpu.memory_space<vmem>>, %arg5: memref<1x8xf32, #tpu.memory_space<vmem>>, %arg6: memref<16x8xf32, #tpu.memory_space<vmem>>) attributes {dimension_semantics = [#tpu.dimension_semantics<parallel>], iteration_bounds = array<i64: 4>, scalar_prefetch = 0 : i64, scratch_operands = 0 : i64, tpu.core_type = #tpu.core_type<tc>, window_params = [{transform_indices = @transform_0, window_bounds = array<i64: 16, 16>}, {pipeline_mode = #tpu.pipeline_mode<synchronous>, transform_indices = @transform_1, window_bounds = array<i64: 16, 32>}, {pipeline_mode = #tpu.pipeline_mode<synchronous>, transform_indices = @transform_2, window_bounds = array<i64: 1, 32>}, {pipeline_mode = #tpu.pipeline_mode<synchronous>, transform_indices = @transform_3, window_bounds = array<i64: 32, 8>}, {pipeline_mode = #tpu.pipeline_mode<synchronous>, transform_indices = @transform_4, window_bounds = array<i64: 1, 8>}, {transform_indices = @transform_5, window_bounds = array<i64: 16, 8>}]} {
    %c0 = arith.constant 0 : index
    %c0_0 = arith.constant 0 : index
    %0 = vector.load %arg1[%c0, %c0_0] : memref<16x16xf32, #tpu.memory_space<vmem>>, vector<16x16xf32>
    %c0_1 = arith.constant 0 : index
    %c0_2 = arith.constant 0 : index
    %1 = vector.load %arg2[%c0_1, %c0_2] : memref<16x32xf32, #tpu.memory_space<vmem>>, vector<16x32xf32>
    %cst = arith.constant dense<0.000000e+00> : vector<16x32xf32>
    %2 = tpu.matmul %0, %1, %cst {dimension_numbers = #tpu.dot_dimension_numbers<[1], [0], [0], [1], [0, 0, 1, 1], [], []>} : vector<16x16xf32>, vector<16x32xf32>, vector<16x32xf32> -> vector<16x32xf32>
    %c0_3 = arith.constant 0 : index
    %c0_4 = arith.constant 0 : index
    %3 = vector.load %arg3[%c0_3, %c0_4] : memref<1x32xf32, #tpu.memory_space<vmem>>, vector<1x32xf32>
    %4 = vector.broadcast %3 : vector<1x32xf32> to vector<16x32xf32>
    %5 = arith.addf %2, %4 : vector<16x32xf32>
    %cst_5 = arith.constant 0.000000e+00 : f32
    %6 = vector.broadcast %cst_5 : f32 to vector<16x32xf32>
    %7 = arith.maximumf %5, %6 : vector<16x32xf32>
    %c0_6 = arith.constant 0 : index
    %c0_7 = arith.constant 0 : index
    %8 = vector.load %arg4[%c0_6, %c0_7] : memref<32x8xf32, #tpu.memory_space<vmem>>, vector<32x8xf32>
    %cst_8 = arith.constant dense<0.000000e+00> : vector<16x8xf32>
    %9 = tpu.matmul %7, %8, %cst_8 {dimension_numbers = #tpu.dot_dimension_numbers<[1], [0], [0], [1], [0, 0, 1, 1], [], []>} : vector<16x32xf32>, vector<32x8xf32>, vector<16x8xf32> -> vector<16x8xf32>
    %c0_9 = arith.constant 0 : index
    %c0_10 = arith.constant 0 : index
    %10 = vector.load %arg5[%c0_9, %c0_10] : memref<1x8xf32, #tpu.memory_space<vmem>>, vector<1x8xf32>
    %11 = vector.broadcast %10 : vector<1x8xf32> to vector<16x8xf32>
    %12 = arith.addf %9, %11 : vector<16x8xf32>
    %13 = arith.negf %12 : vector<16x8xf32>
    %14 = math.exp %13 : vector<16x8xf32>
    %cst_11 = arith.constant 1.000000e+00 : f32
    %15 = vector.broadcast %cst_11 : f32 to vector<16x8xf32>
    %16 = arith.addf %15, %14 : vector<16x8xf32>
    %17 = arith.divf %15, %16 : vector<16x8xf32>
    %c0_12 = arith.constant 0 : index
    %c0_13 = arith.constant 0 : index
    %18 = vector.load %arg6[%c0_12, %c0_13] : memref<16x8xf32, #tpu.memory_space<vmem>>, vector<16x8xf32>
    tpu.vector_store %arg6[%c0_12, %c0_13], %17 {strides = array<i32>} : memref<16x8xf32, #tpu.memory_space<vmem>>, vector<16x8xf32>,
    return
  }
  func.func @transform_0(%arg0: i32) -> (i32, i32) {
    %c0_i32 = arith.constant 0 : i32
    %c0_i32_0 = arith.constant 0 : i32
    return %arg0, %c0_i32 : i32, i32
  }
  func.func @transform_1(%arg0: i32) -> (i32, i32) {
    %c0_i32 = arith.constant 0 : i32
    %c0_i32_0 = arith.constant 0 : i32
    %c0_i32_1 = arith.constant 0 : i32
    return %c0_i32, %c0_i32_0 : i32, i32
  }
  func.func @transform_2(%arg0: i32) -> (i32, i32) {
    %c0_i32 = arith.constant 0 : i32
    %c0_i32_0 = arith.constant 0 : i32
    %c0_i32_1 = arith.constant 0 : i32
    return %c0_i32, %c0_i32_0 : i32, i32
  }
  func.func @transform_3(%arg0: i32) -> (i32, i32) {
    %c0_i32 = arith.constant 0 : i32
    %c0_i32_0 = arith.constant 0 : i32
    %c0_i32_1 = arith.constant 0 : i32
    return %c0_i32, %c0_i32_0 : i32, i32
  }
  func.func @transform_4(%arg0: i32) -> (i32, i32) {
    %c0_i32 = arith.constant 0 : i32
    %c0_i32_0 = arith.constant 0 : i32
    %c0_i32_1 = arith.constant 0 : i32
    return %c0_i32, %c0_i32_0 : i32, i32
  }
  func.func @transform_5(%arg0: i32) -> (i32, i32) {
    %c0_i32 = arith.constant 0 : i32
    %c0_i32_0 = arith.constant 0 : i32
    return %arg0, %c0_i32 : i32, i32
  }
}

</mosaic_0001>

<llo_original>
// kernel: tpu_custom_call.1
$region0: #{tpu_custom_call.1}
  #allocation0 [shape = 'u32[]', space=smem, size = 0x4, offset = 0x4, fixed_abs, tag = 'smem constant byte address 0x4 - core index']
  #allocation1 [shape = 'u32[144,128]{1,0:T(1,128)}', space=vmem, size = 0x12000, scoped, tag = 'internal scratch']
  %s0 = inlined_call_operand.vmem [shape: f32[50,16], index: 0, kind: input, shape index: {}]
  %s1 = inlined_call_operand.vmem [shape: f32[16,32], index: 1, kind: input, shape index: {}]
  %s2 = inlined_call_operand.vmem [shape: f32[1,32], index: 2, kind: input, shape index: {}]
  %s3 = inlined_call_operand.vmem [shape: f32[32,8], index: 3, kind: input, shape index: {}]
  %s4 = inlined_call_operand.vmem [shape: f32[1,8], index: 4, kind: input, shape index: {}]
  %s5 = inlined_call_operand.vmem [shape: f32[50,8], index: 5, kind: output, shape index: {}]
  %s6 = sld [smem:[#allocation0]]
  $region101: #{tpu_custom_call.1} parent=0
    _
  %s8 = ssub.s32 1, %s6
  %s9 = scalar_select 0, %s8, %s6
  $region1: #{tpu_custom_call.1} parent=0
    #allocation2 [shape = 'u8[16384]{0}', space=vmem, size = 0x4000, scoped, tag = 'output window, operand 0']
    loop: start=0, step=1, limit=6
    $region2: #{tpu_custom_call.1} parent=1 // loop_pre_header
      _
    $region3: #{tpu_custom_call.1} parent=1 // loop_header
      %s11 = sphi 0, %s15
      %p12 = scmp.ge.s32.totalorder %s11, 6
      %s21 = sphi 0, %s23
      %s24 = sphi 0, %s21
      %s25 = sphi 0, %s24
      %s41 = sphi 0, %s25
      %s45 = sphi 0, %s45
      %s47 = sphi 0, %s45
      %s48 = sphi 0, %s47
      %s62 = sphi 0, %s48
      %s66 = sphi 0, %s66
      %s68 = sphi 0, %s66
      %s69 = sphi 0, %s68
      %s83 = sphi 0, %s69
      %s87 = sphi 0, %s87
      %s89 = sphi 0, %s87
      %s90 = sphi 0, %s89
      %s104 = sphi 0, %s90
      %s108 = sphi 0, %s108
      %s110 = sphi 0, %s108
      %s111 = sphi 0, %s110
      %s125 = sphi 0, %s111
      %s131 = sphi 0, %s133
      %s134 = sphi 0, %s131
      %s135 = sphi 0, %s134
      %s151 = sphi 0, %s135
    $region4: #{tpu_custom_call.1} parent=1 // loop_header_branch
      %14 = sbr.rel (%p12) target = $region8
    $region5: #{tpu_custom_call.1} parent=1 // loop_body
      %s16 = ssub.s32 %s11, 1
      %s17 = ssub.s32 %s11, 2
      %s18 = sadd.s32 %s11, 1
      %s19 = ssub.s32 %s11, %s18
      %p20 = scmp.eq.s32.totalorder %s19, 0
      %s22 = sadd.s32 %s21, 1
      %s23 = scalar_select %p20, %s21, %s22
      %p26 = pneg %p20
      %p27 = scmp.eq.s32.totalorder %s11, 3
      %p28 = por %p26, %p27
      %p29 = scmp.ne.s32.totalorder %s21, %s24
      %p30 = scmp.eq.s32.totalorder %s11, 0
      %p31 = por %p29, %p30
      %p32 = scmp.ne.s32.totalorder %s21, %s24
      %p33 = scmp.eq.s32.totalorder %s16, 3
      %p34 = por %p32, %p33
      %p35 = scmp.ne.s32.totalorder %s24, %s25
      %p36 = scmp.eq.s32.totalorder %s16, 0
      %p37 = por %p35, %p36
      %p38 = scmp.ne.s32.totalorder %s24, %s25
      %p39 = scmp.eq.s32.totalorder %s17, 3
      %p40 = por %p38, %p39
      %p42 = scmp.ne.s32.totalorder %s25, %s41
      %p43 = scmp.eq.s32.totalorder %s17, 0
      %p44 = por %p42, %p43
      %s46 = sadd.s32 %s45, 1
      %p49 = scmp.eq.s32.totalorder %s11, 3
      %p50 = scmp.ne.s32.totalorder %s45, %s47
      %p51 = scmp.eq.s32.totalorder %s11, 0
      %p52 = por %p50, %p51
      %p53 = scmp.ne.s32.totalorder %s45, %s47
      %p54 = scmp.eq.s32.totalorder %s16, 3
      %p55 = por %p53, %p54
      %p56 = scmp.ne.s32.totalorder %s47, %s48
      %p57 = scmp.eq.s32.totalorder %s16, 0
      %p58 = por %p56, %p57
      %p59 = scmp.ne.s32.totalorder %s47, %s48
      %p60 = scmp.eq.s32.totalorder %s17, 3
      %p61 = por %p59, %p60
      %p63 = scmp.ne.s32.totalorder %s48, %s62
      %p64 = scmp.eq.s32.totalorder %s17, 0
      %p65 = por %p63, %p64
      %s67 = sadd.s32 %s66, 1
      %p70 = scmp.eq.s32.totalorder %s11, 3
      %p71 = scmp.ne.s32.totalorder %s66, %s68
      %p72 = scmp.eq.s32.totalorder %s11, 0
      %p73 = por %p71, %p72
      %p74 = scmp.ne.s32.totalorder %s66, %s68
      %p75 = scmp.eq.s32.totalorder %s16, 3
      %p76 = por %p74, %p75
      %p77 = scmp.ne.s32.totalorder %s68, %s69
      %p78 = scmp.eq.s32.totalorder %s16, 0
      %p79 = por %p77, %p78
      %p80 = scmp.ne.s32.totalorder %s68, %s69
      %p81 = scmp.eq.s32.totalorder %s17, 3
      %p82 = por %p80, %p81
      %p84 = scmp.ne.s32.totalorder %s69, %s83
      %p85 = scmp.eq.s32.totalorder %s17, 0
      %p86 = por %p84, %p85
      %s88 = sadd.s32 %s87, 1
      %p91 = scmp.eq.s32.totalorder %s11, 3
      %p92 = scmp.ne.s32.totalorder %s87, %s89
      %p93 = scmp.eq.s32.totalorder %s11, 0
      %p94 = por %p92, %p93
      %p95 = scmp.ne.s32.totalorder %s87, %s89
      %p96 = scmp.eq.s32.totalorder %s16, 3
      %p97 = por %p95, %p96
      %p98 = scmp.ne.s32.totalorder %s89, %s90
      %p99 = scmp.eq.s32.totalorder %s16, 0
      %p100 = por %p98, %p99
      %p101 = scmp.ne.s32.totalorder %s89, %s90
      %p102 = scmp.eq.s32.totalorder %s17, 3
      %p103 = por %p101, %p102
      %p105 = scmp.ne.s32.totalorder %s90, %s104
      %p106 = scmp.eq.s32.totalorder %s17, 0
      %p107 = por %p105, %p106
      %s109 = sadd.s32 %s108, 1
      %p112 = scmp.eq.s32.totalorder %s11, 3
      %p113 = scmp.ne.s32.totalorder %s108, %s110
      %p114 = scmp.eq.s32.totalorder %s11, 0
      %p115 = por %p113, %p114
      %p116 = scmp.ne.s32.totalorder %s108, %s110
      %p117 = scmp.eq.s32.totalorder %s16, 3
      %p118 = por %p116, %p117
      %p119 = scmp.ne.s32.totalorder %s110, %s111
      %p120 = scmp.eq.s32.totalorder %s16, 0
      %p121 = por %p119, %p120
      %p122 = scmp.ne.s32.totalorder %s110, %s111
      %p123 = scmp.eq.s32.totalorder %s17, 3
      %p124 = por %p122, %p123
      %p126 = scmp.ne.s32.totalorder %s111, %s125
      %p127 = scmp.eq.s32.totalorder %s17, 0
      %p128 = por %p126, %p127
      %s129 = ssub.s32 %s11, %s18
      %p130 = scmp.eq.s32.totalorder %s129, 0
      %s132 = sadd.s32 %s131, 1
      %s133 = scalar_select %p130, %s131, %s132
      %p136 = pneg %p130
      %p137 = scmp.eq.s32.totalorder %s11, 3
      %p138 = por %p136, %p137
      %p139 = scmp.ne.s32.totalorder %s131, %s134
      %p140 = scmp.eq.s32.totalorder %s11, 0
      %p141 = por %p139, %p140
      %p142 = scmp.ne.s32.totalorder %s131, %s134
      %p143 = scmp.eq.s32.totalorder %s16, 3
      %p144 = por %p142, %p143
      %p145 = scmp.ne.s32.totalorder %s134, %s135
      %p146 = scmp.eq.s32.totalorder %s16, 0
      %p147 = por %p145, %p146
      %p148 = scmp.ne.s32.totalorder %s134, %s135
      %p149 = scmp.eq.s32.totalorder %s17, 3
      %p150 = por %p148, %p149
      %p152 = scmp.ne.s32.totalorder %s135, %s151
      %p153 = scmp.eq.s32.totalorder %s17, 0
      %p154 = por %p152, %p153
      %p155 = scmp.le.s32.totalorder 1, %s11
      %p156 = scmp.lt.s32.totalorder %s11, 5
      %p157 = pnand %p155, %p156
      %p158 = pneg %p157
      // Predicated region
      $region9: #{tpu_custom_call.1} parent=5 // pred_check
        _
      $region10: #{tpu_custom_call.1} parent=5 // pred_check_branch
        %160 = sbr.rel (%p157) target = $region12
      $region11: #{tpu_custom_call.1} parent=5 // pred_region
        %s161 = ssub.s32 %s11, 1
        // Predicated region
        $region13: #{tpu_custom_call.1} parent=11 // pred_check
          %p162 = pneg %p58
        $region14: #{tpu_custom_call.1} parent=11 // pred_check_branch
          %164 = sbr.rel (%p162) target = $region16
        $region15: #{tpu_custom_call.1} parent=11 // pred_region
          _
        $region16: #{tpu_custom_call.1} parent=11 // pred_fallthru
          _
        // Predicated region
        $region17: #{tpu_custom_call.1} parent=11 // pred_check
          %p165 = pneg %p79
        $region18: #{tpu_custom_call.1} parent=11 // pred_check_branch
          %167 = sbr.rel (%p165) target = $region20
        $region19: #{tpu_custom_call.1} parent=11 // pred_region
          _
        $region20: #{tpu_custom_call.1} parent=11 // pred_fallthru
          _
        // Predicated region
        $region21: #{tpu_custom_call.1} parent=11 // pred_check
          %p168 = pneg %p100
        $region22: #{tpu_custom_call.1} parent=11 // pred_check_branch
          %170 = sbr.rel (%p168) target = $region24
        $region23: #{tpu_custom_call.1} parent=11 // pred_region
          _
        $region24: #{tpu_custom_call.1} parent=11 // pred_fallthru
          _
        // Predicated region
        $region25: #{tpu_custom_call.1} parent=11 // pred_check
          %p171 = pneg %p121
        $region26: #{tpu_custom_call.1} parent=11 // pred_check_branch
          %173 = sbr.rel (%p171) target = $region28
        $region27: #{tpu_custom_call.1} parent=11 // pred_region
          _
        $region28: #{tpu_custom_call.1} parent=11 // pred_fallthru
          _
      $region12: #{tpu_custom_call.1} parent=5 // pred_fallthru
        _
      %p174 = scmp.lt.s32.totalorder %s11, 4
      // Predicated region
      $region29: #{tpu_custom_call.1} parent=5 // pred_check
        %p175 = pneg %p174
      $region30: #{tpu_custom_call.1} parent=5 // pred_check_branch
        %177 = sbr.rel (%p175) target = $region32
      $region31: #{tpu_custom_call.1} parent=5 // pred_region
        // Predicated region
        $region33: #{tpu_custom_call.1} parent=31 // pred_check
          %p178 = pneg %p31
        $region34: #{tpu_custom_call.1} parent=31 // pred_check_branch
          %180 = sbr.rel (%p178) target = $region36
        $region35: #{tpu_custom_call.1} parent=31 // pred_region
          %s181 = smul.u32 2, %s11
          %s182 = ssub.s32 7, %s181
          %p183 = scmp.lt.s32.totalorder %s182, 2
          %s184 = scalar_select %p183, %s182, 2
          %s185 = smul.u32 128, %s184
          %p186 = scmp.lt.s32.totalorder %s181, 6
          %s187 = scalar_select %p186, %s181, 6
          %s188 = smul.addr %s187, 8
          %s189 = scalar_lea.vmem %s0, %s188
          %s190 = smul.u32 2, %s11
          %s191 = ssub.s32 7, %s190
          %p192 = scmp.lt.s32.totalorder %s191, 2
          %s193 = scalar_select %p192, %s191, 2
          %s194 = smul.u32 128, %s193
        $region36: #{tpu_custom_call.1} parent=31 // pred_fallthru
          _
      $region32: #{tpu_custom_call.1} parent=5 // pred_fallthru
        _
      %p195 = scmp.le.s32.totalorder 1, %s11
      %p196 = scmp.lt.s32.totalorder %s11, 5
      %p197 = pnand %p195, %p196
      %p198 = pneg %p197
      // Predicated region
      $region37: #{tpu_custom_call.1} parent=5 // pred_check
        _
      $region38: #{tpu_custom_call.1} parent=5 // pred_check_branch
        %200 = sbr.rel (%p197) target = $region40
      $region39: #{tpu_custom_call.1} parent=5 // pred_region
        %s201 = ssub.s32 %s11, 1
        %s202 = smul.u32 2, %s16
        %s203 = ssub.s32 7, %s202
        %p204 = scmp.lt.s32.totalorder %s203, 2
        %s205 = scalar_select %p204, %s203, 2
        %s206 = smul.u32 128, %s205
        %p207 = scmp.lt.s32.totalorder %s202, 6
        %s208 = scalar_select %p207, %s202, 6
        %s209 = smul.addr %s208, 8
        %s210 = scalar_lea.vmem %s0, %s209
        %p211 = pneg %p37
        %p212 = pneg %p34
        %p213 = pneg %p58
        %p214 = pneg %p55
        %p215 = pneg %p79
        %p216 = pneg %p76
        %p217 = pneg %p100
        %p218 = pneg %p97
        %p219 = pneg %p121
        %p220 = pneg %p118
        %p221 = pneg %p147
        %p222 = pneg %p144
        %s223 = sand.u32 %s134, 1
        %s224 = sand.u32 %s134, 1
        %s225 = smul.addr %s224, 16
        %s226 = scalar_lea.vmem [#allocation2], %s225
        %s227 = smul.u32 2, %s16
        %s228 = ssub.s32 7, %s227
        %p229 = scmp.lt.s32.totalorder %s228, 2
        %s230 = scalar_select %p229, %s228, 2
        %s231 = smul.u32 128, %s230
        %p232 = scmp.lt.s32.totalorder %s227, 6
        %s233 = scalar_select %p232, %s227, 6
        %s234 = smul.addr %s233, 8
        %s235 = scalar_lea.vmem %s0, %s234
        %s236 = smul.u32 2, %s16
        %s237 = ssub.s32 7, %s236
        %p238 = scmp.lt.s32.totalorder %s237, 2
        %s239 = scalar_select %p238, %s237, 2
        %s240 = smul.u32 128, %s239
        %s241 = smul.u32 2, %s16
        %s242 = ssub.s32 7, %s241
        %p243 = scmp.lt.s32.totalorder %s242, 2
        %s244 = scalar_select %p243, %s242, 2
        %s245 = smul.u32 128, %s244
        %v246 = vld [vmem:[%s235] sm:$0xff]
        %v247 = vld [vmem:[%s235 + $0x8] sm:$0xff]
        %v248 = vld [vmem:[%s1] sm:$0xff]
        %v249 = vld [vmem:[%s1 + $0x8] sm:$0xff]
        %v250 = vld [vmem:[%s2] sm:$0x1]
        %v252 = vlaneseq
        %v253 = vshrl.u32 %v252, 7
        %v254 = vsub.s32 0, %v253
        %v255 = vrot.slane %v250, %v254
        %vm257 = vcmask 130048
        %v259 = vsel %vm257, %v246, 0
        %v262 = vsel %vm257, %v247, 0
        %264 = vmatprep.subr.mxu0 0.0
        %265 = vmatpush1.msra.mxu0 0.0
        %266 = vmatprep.subr.mxu0 0.0
        %267 = vmatpush1.msra.mxu0 0.0
        %268 = vmatprep.subr.mxu0 0.0
        %269 = vmatpush1.msra.mxu0 0.0
        %270 = vmatprep.subr.mxu0 0.0
        %271 = vmatpush1.msra.mxu0 0.0
        %272 = vmatprep.subr.mxu0 0.0
        %273 = vmatpush1.msra.mxu0 0.0
        %274 = vmatprep.subr.mxu0 0.0
        %275 = vmatpush1.msra.mxu0 0.0
        %276 = vmatprep.subr.mxu0 0.0
        %277 = vmatpush1.msra.mxu0 0.0
        %278 = vmatprep.subr.mxu0 0.0
        %279 = vmatpush1.msra.mxu0 0.0
        %280 = vmatprep.subr.mxu0 0.0
        %281 = vmatpush1.msra.mxu0 0.0
        %282 = vmatprep.subr.mxu0 0.0
        %283 = vmatpush1.msra.mxu0 0.0
        %284 = vmatprep.subr.mxu0 0.0
        %285 = vmatpush1.msra.mxu0 0.0
        %286 = vmatprep.subr.mxu0 0.0
        %287 = vmatpush1.msra.mxu0 0.0
        %288 = vmatprep.subr.mxu0 0.0
        %289 = vmatpush1.msra.mxu0 0.0
        %290 = vmatprep.subr.mxu0 0.0
        %291 = vmatpush1.msra.mxu0 0.0
        %292 = vmatprep.subr.mxu0 0.0
        %293 = vmatpush1.msra.mxu0 %v249
        %294 = vmatprep.subr.mxu0 0.0
        %295 = vmatpush1.msra.mxu0 %v248
        %296 = vmatprep.subr.mxu0 0.0
        %297 = vmatpush2.msra.mxu0 0.0
        %298 = vmatprep.subr.mxu0 0.0
        %299 = vmatpush2.msra.mxu0 0.0
        %300 = vmatprep.subr.mxu0 0.0
        %301 = vmatpush2.msra.mxu0 0.0
        %302 = vmatprep.subr.mxu0 0.0
        %303 = vmatpush2.msra.mxu0 0.0
        %304 = vmatprep.subr.mxu0 0.0
        %305 = vmatpush2.msra.mxu0 0.0
        %306 = vmatprep.subr.mxu0 0.0
        %307 = vmatpush2.msra.mxu0 0.0
        %308 = vmatprep.subr.mxu0 0.0
        %309 = vmatpush2.msra.mxu0 0.0
        %310 = vmatprep.subr.mxu0 0.0
        %311 = vmatpush2.msra.mxu0 0.0
        %312 = vmatprep.subr.mxu0 0.0
        %313 = vmatpush2.msra.mxu0 0.0
        %314 = vmatprep.subr.mxu0 0.0
        %315 = vmatpush2.msra.mxu0 0.0
        %316 = vmatprep.subr.mxu0 0.0
        %317 = vmatpush2.msra.mxu0 0.0
        %318 = vmatprep.subr.mxu0 0.0
        %319 = vmatpush2.msra.mxu0 0.0
        %320 = vmatprep.subr.mxu0 0.0
        %321 = vmatpush2.msra.mxu0 0.0
        %322 = vmatprep.subr.mxu0 0.0
        %323 = vmatpush2.msra.mxu0 0.0
        %324 = vmatprep.subr.mxu0 0.0
        %325 = vmatpush2.msra.mxu0 0.0
        %326 = vmatprep.subr.mxu0 0.0
        %327 = vmatpush2.msra.mxu0 0.0
        %328 = vmatprep.mubr.f32.mxu0 0.0
        %329 = vmatmul.mubr.f32.gmra.mxu0 %v259
        %v330 = vpop.f32.mrf.mxu0
        %v331 = vadd.f32 %v255, %v330
        %v332 = vpop.f32.mrf.mxu0
        %333 = vmatprep.mubr.f32.mxu0 0.0
        %334 = vmatmul.mubr.f32.gmra.mxu0 %v262
        %v335 = vpop.f32.mrf.mxu0
        %v336 = vadd.f32 %v255, %v335
        %v337 = vpop.f32.mrf.mxu0
        %338 = vdwg.mxu0
        %v339 = vmax.f32 %v331, 0.0
        %v340 = vmax.f32 %v336, 0.0
        %v341 = vld [vmem:[%s3] sm:$0xff]
        %v342 = vld [vmem:[%s3 + $0x8] sm:$0xff]
        %v343 = vld [vmem:[%s3 + $0x10] sm:$0xff]
        %v344 = vld [vmem:[%s3 + $0x18] sm:$0xff]
        %v345 = vld [vmem:[%s4] sm:$0x1]
        %v347 = vlaneseq
        %v348 = vshrl.u32 %v347, 7
        %v349 = vsub.s32 0, %v348
        %v350 = vrot.slane %v345, %v349
        %vm352 = vcmask 261120
        %v354 = vsel %vm352, %v339, 0
        %v357 = vsel %vm352, %v340, 0
        %359 = vmatprep.subr.mxu0 0.0
        %360 = vmatpush1.msra.mxu0 0.0
        %361 = vmatprep.subr.mxu0 0.0
        %362 = vmatpush1.msra.mxu0 0.0
        %363 = vmatprep.subr.mxu0 0.0
        %364 = vmatpush1.msra.mxu0 0.0
        %365 = vmatprep.subr.mxu0 0.0
        %366 = vmatpush1.msra.mxu0 0.0
        %367 = vmatprep.subr.mxu0 0.0
        %368 = vmatpush1.msra.mxu0 0.0
        %369 = vmatprep.subr.mxu0 0.0
        %370 = vmatpush1.msra.mxu0 0.0
        %371 = vmatprep.subr.mxu0 0.0
        %372 = vmatpush1.msra.mxu0 0.0
        %373 = vmatprep.subr.mxu0 0.0
        %374 = vmatpush1.msra.mxu0 0.0
        %375 = vmatprep.subr.mxu0 0.0
        %376 = vmatpush1.msra.mxu0 0.0
        %377 = vmatprep.subr.mxu0 0.0
        %378 = vmatpush1.msra.mxu0 0.0
        %379 = vmatprep.subr.mxu0 0.0
        %380 = vmatpush1.msra.mxu0 0.0
        %381 = vmatprep.subr.mxu0 0.0
        %382 = vmatpush1.msra.mxu0 0.0
        %383 = vmatprep.subr.mxu0 0.0
        %384 = vmatpush1.msra.mxu0 %v344
        %385 = vmatprep.subr.mxu0 0.0
        %386 = vmatpush1.msra.mxu0 %v343
        %387 = vmatprep.subr.mxu0 0.0
        %388 = vmatpush1.msra.mxu0 %v342
        %389 = vmatprep.subr.mxu0 0.0
        %390 = vmatpush1.msra.mxu0 %v341
        %391 = vmatprep.subr.mxu0 0.0
        %392 = vmatpush2.msra.mxu0 0.0
        %393 = vmatprep.subr.mxu0 0.0
        %394 = vmatpush2.msra.mxu0 0.0
        %395 = vmatprep.subr.mxu0 0.0
        %396 = vmatpush2.msra.mxu0 0.0
        %397 = vmatprep.subr.mxu0 0.0
        %398 = vmatpush2.msra.mxu0 0.0
        %399 = vmatprep.subr.mxu0 0.0
        %400 = vmatpush2.msra.mxu0 0.0
        %401 = vmatprep.subr.mxu0 0.0
        %402 = vmatpush2.msra.mxu0 0.0
        %403 = vmatprep.subr.mxu0 0.0
        %404 = vmatpush2.msra.mxu0 0.0
        %405 = vmatprep.subr.mxu0 0.0
        %406 = vmatpush2.msra.mxu0 0.0
        %407 = vmatprep.subr.mxu0 0.0
        %408 = vmatpush2.msra.mxu0 0.0
        %409 = vmatprep.subr.mxu0 0.0
        %410 = vmatpush2.msra.mxu0 0.0
        %411 = vmatprep.subr.mxu0 0.0
        %412 = vmatpush2.msra.mxu0 0.0
        %413 = vmatprep.subr.mxu0 0.0
        %414 = vmatpush2.msra.mxu0 0.0
        %415 = vmatprep.subr.mxu0 0.0
        %416 = vmatpush2.msra.mxu0 0.0
        %417 = vmatprep.subr.mxu0 0.0
        %418 = vmatpush2.msra.mxu0 0.0
        %419 = vmatprep.subr.mxu0 0.0
        %420 = vmatpush2.msra.mxu0 0.0
        %421 = vmatprep.subr.mxu0 0.0
        %422 = vmatpush2.msra.mxu0 0.0
        %423 = vmatprep.mubr.f32.mxu0 0.0
        %424 = vmatmul.mubr.f32.gmra.mxu0 %v354
        %v425 = vpop.f32.mrf.mxu0
        %v426 = vadd.f32 %v350, %v425
        %v427 = vpop.f32.mrf.mxu0
        %428 = vmatprep.mubr.f32.mxu0 0.0
        %429 = vmatmul.mubr.f32.gmra.mxu0 %v357
        %v430 = vpop.f32.mrf.mxu0
        %v431 = vadd.f32 %v350, %v430
        %v432 = vpop.f32.mrf.mxu0
        %433 = vdwg.mxu0
        %v434 = vxor.u32 %v426, 2147483648
        %v435 = vxor.u32 %v431, 2147483648
        %v436 = vmul.f32 %v434, 1.442695
        %v437 = vpow.pop %v436
        %v438 = vmul.f32 %v435, 1.442695
        %v439 = vpow.pop %v438
        %v440 = vadd.f32 %v437, 1.0
        %v441 = vadd.f32 %v439, 1.0
        %v442 = vrcp.pop %v440
        %v443 = vmul.f32 1.0, %v442
        %v444 = vrcp.pop %v441
        %v445 = vmul.f32 1.0, %v444
        %vm446 = vcmask 64512
        %447 = vst.msk [vmem:[%s226] sm:$0xff] %vm446, %v443
        %448 = vst.msk [vmem:[%s226 + $0x8] sm:$0xff] %vm446, %v445
        %s449 = sand.u32 %s134, 1
        %s450 = sand.u32 %s134, 1
        %s451 = smul.addr %s450, 16
        %s452 = scalar_lea.vmem [#allocation2], %s451
        // Predicated region
        $region41: #{tpu_custom_call.1} parent=39 // pred_check
          %p453 = pneg %p144
        $region42: #{tpu_custom_call.1} parent=39 // pred_check_branch
          %455 = sbr.rel (%p453) target = $region44
        $region43: #{tpu_custom_call.1} parent=39 // pred_region
          %s456 = smul.u32 2, %s16
          %s457 = ssub.s32 7, %s456
          %p458 = scmp.lt.s32.totalorder %s457, 2
          %s459 = scalar_select %p458, %s457, 2
          %s460 = smul.u32 128, %s459
          %p461 = scmp.ne.s32.totalorder 0, %s460
          %s462 = smul.addr %s456, 8
          %s463 = scalar_lea.vmem %s5, %s462
          // Predicated region
          $region45: #{tpu_custom_call.1} parent=43 // pred_check
            %p464 = pneg %p461
          $region46: #{tpu_custom_call.1} parent=43 // pred_check_branch
            %466 = sbr.rel (%p464) target = $region48
          $region47: #{tpu_custom_call.1} parent=43 // pred_region
            // Predicated region
            $region49: #{tpu_custom_call.1} parent=47 // pred_check
              _
            $region50: #{tpu_custom_call.1} parent=47 // pred_check_branch
              %468 = sbr.rel (0) target = $region52
            $region51: #{tpu_custom_call.1} parent=47 // pred_region
              // Predicated region
              $region71: #{tpu_custom_call.1} parent=51 // pred_check
                _
              $region72: #{tpu_custom_call.1} parent=51 // pred_check_branch
                %520 = sbr.rel (0) target = $region74
              $region73: #{tpu_custom_call.1} parent=51 // pred_region
                %s521 = sshrl.u32 %s459, 1
                // While loop
                $region75: #{tpu_custom_call.1} parent=73 // loop_pre_header
                  _
                $region76: #{tpu_custom_call.1} parent=73 // loop_header
                  %s523 = sphi 0, %s525
                  %p524 = scmp.ge.s32.totalorder %s523, %s521
                  %s528 = sphi 0, %s537
                  %s529 = sphi %s452, %s540
                  %s530 = sphi %s463, %s541
                $region77: #{tpu_custom_call.1} parent=73 // loop_header_branch
                  %527 = sbr.rel (%p524) target = $region81
                $region78: #{tpu_custom_call.1} parent=73 // loop_body
                  %v531 = vld [vmem:[%s529] sm:$0xff]
                  %532 = vst [vmem:[%s530] sm:$0xff] %v531
                  %v533 = vld [vmem:[%s529 + $0x8] sm:$0xff]
                  %534 = vst [vmem:[%s530 + $0x8] sm:$0xff] %v533
                  %s535 = sadd.s32 1, %s528
                  %p536 = scmp.ge.s32.totalorder %s535, %s521
                  %s537 = scalar_select %p536, 0, %s535
                  %s538 = smul.u32 %s537, 16
                  %s539 = smul.u32 %s537, 16
                  %s540 = scalar_lea.vmem %s452, %s538 [#allocation2]
                  %s541 = scalar_lea.vmem %s463, %s539
                $region79: #{tpu_custom_call.1} parent=73 // loop_footer
                  %s525 = sadd.s32 %s523, 1
                $region80: #{tpu_custom_call.1} parent=73 // loop_footer_branch
                  %522 = sbr.rel target = $region76
                $region81: #{tpu_custom_call.1} parent=73 // loop_exit
                  _
                %s542 = sshrl.u32 %s459, 1
                %s543 = sand.u32 %s459, 1
                %s544 = smul.u32 %s542, 2
                %s545 = smul.u32 8, %s544
                %s546 = scalar_lea.vmem %s452, %s545 [#allocation2]
                %s547 = smul.u32 8, %s544
                %s548 = scalar_lea.vmem %s463, %s547
                // While loop
                $region82: #{tpu_custom_call.1} parent=73 // loop_pre_header
                  _
                $region83: #{tpu_custom_call.1} parent=73 // loop_header
                  %s550 = sphi 0, %s552
                  %p551 = scmp.ge.s32.totalorder %s550, %s543
                  %s555 = sphi 0, %s562
                  %s556 = sphi %s546, %s565
                  %s557 = sphi %s548, %s566
                $region84: #{tpu_custom_call.1} parent=73 // loop_header_branch
                  %554 = sbr.rel (%p551) target = $region88
                $region85: #{tpu_custom_call.1} parent=73 // loop_body
                  %v558 = vld [vmem:[%s556] sm:$0xff]
                  %559 = vst [vmem:[%s557] sm:$0xff] %v558
                  %s560 = sadd.s32 1, %s555
                  %p561 = scmp.ge.s32.totalorder %s560, %s543
                  %s562 = scalar_select %p561, 0, %s560
                  %s563 = smul.u32 %s562, 8
                  %s564 = smul.u32 %s562, 8
                  %s565 = scalar_lea.vmem %s546, %s563 [#allocation2]
                  %s566 = scalar_lea.vmem %s548, %s564
                $region86: #{tpu_custom_call.1} parent=73 // loop_footer
                  %s552 = sadd.s32 %s550, 1
                $region87: #{tpu_custom_call.1} parent=73 // loop_footer_branch
                  %549 = sbr.rel target = $region83
                $region88: #{tpu_custom_call.1} parent=73 // loop_exit
                  _
              $region74: #{tpu_custom_call.1} parent=51 // pred_fallthru
                _
              // Predicated region
              $region89: #{tpu_custom_call.1} parent=51 // pred_check
                _
              $region90: #{tpu_custom_call.1} parent=51 // pred_check_branch
                %568 = sbr.rel target = $region92
              $region91: #{tpu_custom_call.1} parent=51 // pred_region
                _
              $region92: #{tpu_custom_call.1} parent=51 // pred_fallthru
                _
            $region52: #{tpu_custom_call.1} parent=47 // pred_fallthru
              _
            // Predicated region
            $region53: #{tpu_custom_call.1} parent=47 // pred_check
              _
            $region54: #{tpu_custom_call.1} parent=47 // pred_check_branch
              %470 = sbr.rel target = $region56
            $region55: #{tpu_custom_call.1} parent=47 // pred_region
              %s472 = ssub.s32 256, 1
              %s473 = sshrl.u32 %s459, 1
              // While loop
              $region57: #{tpu_custom_call.1} parent=55 // loop_pre_header
                _
              $region58: #{tpu_custom_call.1} parent=55 // loop_header
                %s475 = sphi 0, %s477
                %p476 = scmp.ge.s32.totalorder %s475, %s473
                %s480 = sphi 0, %s489
                %s481 = sphi %s452, %s492
                %s482 = sphi %s463, %s493
              $region59: #{tpu_custom_call.1} parent=55 // loop_header_branch
                %479 = sbr.rel (%p476) target = $region63
              $region60: #{tpu_custom_call.1} parent=55 // loop_body
                %v483 = vld [vmem:[%s481] sm:%s472]
                %484 = vst [vmem:[%s482] sm:%s472] %v483
                %v485 = vld [vmem:[%s481 + $0x8] sm:%s472]
                %486 = vst [vmem:[%s482 + $0x8] sm:%s472] %v485
                %s487 = sadd.s32 1, %s480
                %p488 = scmp.ge.s32.totalorder %s487, %s473
                %s489 = scalar_select %p488, 0, %s487
                %s490 = smul.u32 %s489, 16
                %s491 = smul.u32 %s489, 16
                %s492 = scalar_lea.vmem %s452, %s490 [#allocation2]
                %s493 = scalar_lea.vmem %s463, %s491
              $region61: #{tpu_custom_call.1} parent=55 // loop_footer
                %s477 = sadd.s32 %s475, 1
              $region62: #{tpu_custom_call.1} parent=55 // loop_footer_branch
                %474 = sbr.rel target = $region58
              $region63: #{tpu_custom_call.1} parent=55 // loop_exit
                _
              %s494 = sshrl.u32 %s459, 1
              %s495 = sand.u32 %s459, 1
              %s496 = smul.u32 %s494, 2
              %s497 = smul.u32 8, %s496
              %s498 = scalar_lea.vmem %s452, %s497 [#allocation2]
              %s499 = smul.u32 8, %s496
              %s500 = scalar_lea.vmem %s463, %s499
              // While loop
              $region64: #{tpu_custom_call.1} parent=55 // loop_pre_header
                _
              $region65: #{tpu_custom_call.1} parent=55 // loop_header
                %s502 = sphi 0, %s504
                %p503 = scmp.ge.s32.totalorder %s502, %s495
                %s507 = sphi 0, %s514
                %s508 = sphi %s498, %s517
                %s509 = sphi %s500, %s518
              $region66: #{tpu_custom_call.1} parent=55 // loop_header_branch
                %506 = sbr.rel (%p503) target = $region70
              $region67: #{tpu_custom_call.1} parent=55 // loop_body
                %v510 = vld [vmem:[%s508] sm:%s472]
                %511 = vst [vmem:[%s509] sm:%s472] %v510
                %s512 = sadd.s32 1, %s507
                %p513 = scmp.ge.s32.totalorder %s512, %s495
                %s514 = scalar_select %p513, 0, %s512
                %s515 = smul.u32 %s514, 8
                %s516 = smul.u32 %s514, 8
                %s517 = scalar_lea.vmem %s498, %s515 [#allocation2]
                %s518 = scalar_lea.vmem %s500, %s516
              $region68: #{tpu_custom_call.1} parent=55 // loop_footer
                %s504 = sadd.s32 %s502, 1
              $region69: #{tpu_custom_call.1} parent=55 // loop_footer_branch
                %501 = sbr.rel target = $region65
              $region70: #{tpu_custom_call.1} parent=55 // loop_exit
                _
            $region56: #{tpu_custom_call.1} parent=47 // pred_fallthru
              _
          $region48: #{tpu_custom_call.1} parent=43 // pred_fallthru
            _
          %569 = vnop
        $region44: #{tpu_custom_call.1} parent=39 // pred_fallthru
          _
      $region40: #{tpu_custom_call.1} parent=5 // pred_fallthru
        _
      %p570 = scmp.le.s32.totalorder 2, %s11
      // Predicated region
      $region93: #{tpu_custom_call.1} parent=5 // pred_check
        %p571 = pneg %p570
      $region94: #{tpu_custom_call.1} parent=5 // pred_check_branch
        %573 = sbr.rel (%p571) target = $region96
      $region95: #{tpu_custom_call.1} parent=5 // pred_region
        %s574 = ssub.s32 %s11, 2
        // Predicated region
        $region97: #{tpu_custom_call.1} parent=95 // pred_check
          %p575 = pneg %p150
        $region98: #{tpu_custom_call.1} parent=95 // pred_check_branch
          %577 = sbr.rel (%p575) target = $region100
        $region99: #{tpu_custom_call.1} parent=95 // pred_region
          %s578 = sand.u32 %s135, 1
          %s579 = sand.u32 %s135, 1
          %s580 = smul.addr %s579, 16
          %s581 = scalar_lea.vmem [#allocation2], %s580
        $region100: #{tpu_custom_call.1} parent=95 // pred_fallthru
          _
      $region96: #{tpu_custom_call.1} parent=5 // pred_fallthru
        _
    $region6: #{tpu_custom_call.1} parent=1 // loop_footer
      %s15 = sadd.s32 1, %s11
    $region7: #{tpu_custom_call.1} parent=1 // loop_footer_branch
      %10 = sbr.rel target = $region3
    $region8: #{tpu_custom_call.1} parent=1 // loop_exit
      _

</llo_original>
